<compile_context>
chip_gen: v7x
topology: tpu7x:2x2x1
jax: 0.10.0
libtpu: 0.0.40
codegen_flags: <defaults>
</compile_context>

<pallas_src>
import math
from functools import partial

import jax
import jax.numpy as jnp
from jax import lax
from jax.experimental import pallas as pl
from jax.experimental.pallas import tpu as pltpu

_SQRT2 = math.sqrt(2.0)
_LANE = 128
_SUBLANE = 8


def _gelu(x):
    # Exact (erf-based) GELU, matching the BERT-style `gelu` free function.
    return x * 0.5 * (1.0 + lax.erf(x / _SQRT2))


def _round_up(v, m):
    return ((v + m - 1) // m) * m


def _device_info():
    """Best-effort TPU generation / VMEM query (safe defaults if it fails)."""
    kind = ""
    try:
        kind = jax.devices()[0].device_kind.lower()
    except Exception:
        pass
    vmem_cap = 64 * 1024 * 1024  # conservative default (v7x per-core VMEM)
    try:
        info = pltpu.get_tpu_info()
        cap = getattr(info, "vmem_capacity_bytes", None)
        if cap:
            vmem_cap = int(cap)
    except Exception:
        if "v5" in kind or "v6" in kind:
            vmem_cap = 128 * 1024 * 1024
    return vmem_cap, kind


# ---------------------------------------------------------------------------
# Shared math: used by the fused kernel (on VMEM tiles) and by the XLA
# fallback (on full padded arrays).  All intermediates / statistics in f32.
# ---------------------------------------------------------------------------
def _mlp_math(h, ws, lns, *, dims, dims_pad, eps, n_norm, matmul_dtype):
    nlayers = len(dims) - 1
    for i in range(nlayers):
        # MXU matmul, f32 accumulation.  Weights are already in matmul_dtype.
        h = jnp.dot(h.astype(matmul_dtype), ws[i],
                    preferred_element_type=jnp.float32)
        if i < nlayers - 1:
            h = _gelu(h)  # gelu(0) == 0, so zero-padded columns stay zero.
            if n_norm:
                d = dims[i + 1]          # valid feature count (static)
                dpad = dims_pad[i + 1]   # padded feature count (static)
                gamma = lns[2 * i]
                beta = lns[2 * i + 1]
                inv_d = 1.0 / d
                # Padded columns of h are exactly zero -> plain sum is the
                # correct masked sum for the mean.
                mean = jnp.sum(h, axis=-1, keepdims=True) * inv_d
                diff = h - mean
                ss = jnp.sum(diff * diff, axis=-1, keepdims=True)
                if dpad > d:
                    # Padded columns contribute diff == -mean; subtract them
                    # exactly instead of masking (no iota/compare/select).
                    ss = ss - (dpad - d) * (mean * mean)
                var = ss * inv_d
                # Invariant: gamma/beta are zero in padded columns, so padded
                # columns of h stay exactly zero for the next layer.
                h = diff * lax.rsqrt(var + eps) * gamma + beta
    return h


def _fused_mlp_kernel(*refs, dims, dims_pad, eps, n_norm, matmul_dtype):
    nlayers = len(dims) - 1
    x_ref = refs[0]
    ws = [r[...] for r in refs[1 : 1 + nlayers]]
    lns = [r[...] for r in refs[1 + nlayers : 1 + nlayers + 2 * n_norm]]
    o_ref = refs[-1]
    h = _mlp_math(x_ref[...], ws, lns, dims=dims, dims_pad=dims_pad, eps=eps,
                  n_norm=n_norm, matmul_dtype=matmul_dtype)
    o_ref[...] = h.astype(o_ref.dtype)


# ---------------------------------------------------------------------------
# Parameter init (mirrors MLP.__init__, bias=False) + one-time preparation
# (transpose to [in, out], zero-pad to lane multiples, pre-cast weights).
# ---------------------------------------------------------------------------
def mlp_init(key, input_sizes):
    n = len(input_sizes)
    keys = jax.random.split(key, n - 1)
    weights = []
    for i in range(1, n):
        fan_in = input_sizes[i - 1]
        bound = 1.0 / math.sqrt(fan_in)  # PyTorch default kaiming-uniform bound
        w = jax.random.uniform(
            keys[i - 1], (input_sizes[i], input_sizes[i - 1]),
            minval=-bound, maxval=bound, dtype=jnp.float32)
        weights.append(w)
    ln = []
    if n > 2:
        for i in range(1, n - 1):
            ln.append((jnp.ones((input_sizes[i],), jnp.float32),
                       jnp.zeros((input_sizes[i],), jnp.float32)))
    return {"weights": weights, "ln": ln}


def prepare_mlp_params(params, input_sizes, matmul_dtype=jnp.float32):
    """One-time: transpose weights to [in,out], zero-pad to 128 multiples and
    pre-cast them to `matmul_dtype` (so the kernel never casts weights)."""
    dims = tuple(int(d) for d in input_sizes)
    nlayers = len(dims) - 1
    n_norm = nlayers - 1 if len(dims) > 2 else 0
    dims_pad = tuple(_round_up(d, _LANE) for d in dims)

    w_pad = []
    for i, w in enumerate(params["weights"]):        # w: [out, in]
        w_t = jnp.transpose(w)                       # [in, out], done ONCE
        wp = jnp.zeros((dims_pad[i], dims_pad[i + 1]), jnp.float32)
        wp = wp.at[: dims[i], : dims[i + 1]].set(w_t)
        w_pad.append(wp.astype(matmul_dtype))

    ln_pad = []
    for i in range(n_norm):
        gamma, beta = params["ln"][i]
        d, dp = dims[i + 1], dims_pad[i + 1]
        # Must stay ZERO in padded columns (layer-norm padding invariant).
        gp = jnp.zeros((1, dp), jnp.float32).at[0, :d].set(gamma)
        bp = jnp.zeros((1, dp), jnp.float32).at[0, :d].set(beta)
        ln_pad.extend([gp, bp])

    return {"w_pad": tuple(w_pad), "ln_pad": tuple(ln_pad)}


# ---------------------------------------------------------------------------
# Fused forward: single pallas_call, batch-tiled grid, parallel semantics.
# ---------------------------------------------------------------------------
def make_mlp_forward(input_sizes, eps=1e-5, matmul_dtype=jnp.float32,
                     max_batch_tile=None, single_buffer_resident=True):
    dims = tuple(int(d) for d in input_sizes)
    nlayers = len(dims) - 1
    n_norm = nlayers - 1 if len(dims) > 2 else 0
    dims_pad = tuple(_round_up(d, _LANE) for d in dims)

    vmem_cap, kind = _device_info()
    is_v7 = "v7" in kind
    is_v5 = "v5" in kind
    mxu_align = 128 if is_v5 else 256            # MXU M-dim alignment
    vmem_budget_cap = int(0.85 * vmem_cap)       # leave Mosaic headroom
    if max_batch_tile is None:
        # Bigger tiles on 128-MiB VMEM parts (v5e/v6e) amortize grid overhead.
        max_batch_tile = 2048 if vmem_cap >= (96 << 20) else 512

    w_bpe = jnp.dtype(matmul_dtype).itemsize
    w_bytes = sum(dims_pad[i] * dims_pad[i + 1] for i in range(nlayers)) * w_bpe
    ln_bytes = sum(2 * dims_pad[i + 1] * 4 for i in range(n_norm))

    use_single_buffer = single_buffer_resident and hasattr(pl, "Buffered")
    resident_mult = 1 if use_single_buffer else 2
    resident_bytes = (w_bytes + ln_bytes) * resident_mult

    def _resident_spec(shape):
        # Constant index_map -> block never changes across the grid; single
        # buffering halves its VMEM reservation.
        if use_single_buffer:
            return pl.BlockSpec(shape, lambda i: (0, 0),
                                pipeline_mode=pl.Buffered(1))
        return pl.BlockSpec(shape, lambda i: (0, 0))

    kernel = partial(_fused_mlp_kernel, dims=dims, dims_pad=dims_pad, eps=eps,
                     n_norm=n_norm, matmul_dtype=matmul_dtype)

    def forward(prepared, x):
        B, Din = x.shape
        assert Din == dims[0], "input feature dim mismatch"

        # ---- residency guard: all padded weights must fit in VMEM at once.
        # TODO(synk): stream oversized weight matrices with pltpu.emit_pipeline
        # + an extra 'arbitrary' K/N grid axis instead of this XLA fallback.
        bytes_per_row = (2 * (dims_pad[0] + dims_pad[-1]) + 4 * max(dims_pad)) * 4
        rows_avail = (vmem_budget_cap - resident_bytes) // bytes_per_row
        if resident_bytes > int(0.7 * vmem_budget_cap) or rows_avail < _SUBLANE:
            xp = x if Din == dims_pad[0] else jnp.pad(
                x, ((0, 0), (0, dims_pad[0] - Din)))
            h = _mlp_math(xp, list(prepared["w_pad"]), list(prepared["ln_pad"]),
                          dims=dims, dims_pad=dims_pad, eps=eps, n_norm=n_norm,
                          matmul_dtype=matmul_dtype)
            return h[:, : dims[-1]].astype(x.dtype)

        # ---- batch tile selection (sublane-aligned, MXU-aligned, VMEM-capped)
        rows_cap = max((rows_avail // _SUBLANE) * _SUBLANE, _SUBLANE)
        TB = min(_round_up(B, _SUBLANE), max_batch_tile, rows_cap)
        if TB >= mxu_align:
            TB = (TB // mxu_align) * mxu_align
        B_pad = _round_up(B, TB)
        # v7x: 2 TensorCores per chip -> make sure the batch grid has >=2
        # steps so both cores get work.
        if is_v7 and B_pad // TB < 2 and B >= 2 * _SUBLANE:
            TB = _round_up((B + 1) // 2, _SUBLANE)
            B_pad = _round_up(B, TB)

        # ---- pad only when needed (skip the wrapper-side copy if aligned).
        # Padded batch rows are all-zero; they pass through LayerNorm with
        # var=0 -> rsqrt(eps) but diff=0, so outputs are finite and sliced off.
        if B_pad != B or dims_pad[0] != Din:
            x_pad = jnp.zeros((B_pad, dims_pad[0]), x.dtype).at[:B, :Din].set(x)
        else:
            x_pad = x

        in_specs = [pl.BlockSpec((TB, dims_pad[0]), lambda i: (i, 0))]
        for li in range(nlayers):
            in_specs.append(_resident_spec((dims_pad[li], dims_pad[li + 1])))
        for li in range(n_norm):
            in_specs.append(_resident_spec((1, dims_pad[li + 1])))
            in_specs.append(_resident_spec((1, dims_pad[li + 1])))
        out_spec = pl.BlockSpec((TB, dims_pad[-1]), lambda i: (i, 0))

        # VMEM budget: resident weights/LN (x1 or x2), double-buffered x/out,
        # plus activation working set; clamped to 85% of physical VMEM.
        io_bytes = 2 * TB * (dims_pad[0] + dims_pad[-1]) * 4
        act_bytes = 4 * TB * max(dims_pad) * 4
        est = resident_bytes + io_bytes + act_bytes
        vmem_limit = int(min(max(int(est * 1.3), 16 * 1024 * 1024),
                             vmem_budget_cap))

        flops = 2 * B_pad * sum(dims_pad[i] * dims_pad[i + 1]
                                for i in range(nlayers))
        transcendentals = B_pad * (sum(dims_pad[1:-1]) + n_norm)
        bytes_accessed = (B_pad * (dims_pad[0] + dims_pad[-1]) * 4
                          + w_bytes + ln_bytes)

        out_pad = pl.pallas_call(
            kernel,
            out_shape=jax.ShapeDtypeStruct((B_pad, dims_pad[-1]), x.dtype),
            grid=(B_pad // TB,),
            in_specs=in_specs,
            out_specs=out_spec,
            compiler_params=pltpu.CompilerParams(
                dimension_semantics=("parallel",),
                vmem_limit_bytes=vmem_limit),
            cost_estimate=pl.CostEstimate(
                flops=flops, transcendentals=transcendentals,
                bytes_accessed=bytes_accessed),
        )(x_pad, *prepared["w_pad"], *prepared["ln_pad"])

        if B_pad == B and dims_pad[-1] == dims[-1]:
            return out_pad
        return out_pad[:B, : dims[-1]]

    return forward


# ---------------------------------------------------------------------------
# Pure-JAX reference (for a correctness sanity check).
# ---------------------------------------------------------------------------
def mlp_forward_ref(params, x):
    weights = params["weights"]
    nlayers = len(weights)
    for i, w in enumerate(weights):
        x = x @ w.T
        if i < nlayers - 1:
            x = _gelu(x)
            if params["ln"]:
                gamma, beta = params["ln"][i]
                mean = jnp.mean(x, axis=-1, keepdims=True)
                var = jnp.mean(jnp.square(x - mean), axis=-1, keepdims=True)
                x = (x - mean) * lax.rsqrt(var + 1e-5) * gamma + beta
    return x


if __name__ == "__main__":
    input_sizes = (32, 64, 48, 16)  # 3 Linear layers, 2 LayerNorms
    batch = 8

    key = jax.random.PRNGKey(0)
    k_params, k_x = jax.random.split(key)
    params = mlp_init(k_params, input_sizes)
    x = jax.random.normal(k_x, (batch, input_sizes[0]), dtype=jnp.float32)

    # f32 MXU path for exact parity with the reference; set jnp.bfloat16 on
    # v6e/v7x for large shapes (and relax the tolerance accordingly).
    matmul_dtype = jnp.float32
    prepared = prepare_mlp_params(params, input_sizes, matmul_dtype=matmul_dtype)

    try:
        fwd = jax.jit(make_mlp_forward(input_sizes, matmul_dtype=matmul_dtype,
                                       single_buffer_resident=True))
        out = jax.block_until_ready(fwd(prepared, x))
    except Exception:
        # Fallback for jax builds where BlockSpec pipeline_mode / Buffered(1)
        # is unsupported: use default double-buffered resident inputs.
        fwd = jax.jit(make_mlp_forward(input_sizes, matmul_dtype=matmul_dtype,
                                       single_buffer_resident=False))
        out = jax.block_until_ready(fwd(prepared, x))

    ref = jax.block_until_ready(mlp_forward_ref(params, x))
    assert out.shape == (batch, input_sizes[-1])
    tol = 2e-5 if matmul_dtype == jnp.float32 else 2e-2
    assert jnp.allclose(out, ref, atol=tol, rtol=tol), float(
        jnp.max(jnp.abs(out - ref)))

    print("KERNEL_OK")
</pallas_src>

<mosaic_0001>
module attributes {stable_mosaic.version = 11 : i64} {
  func.func @_fused_mlp_kernel(%arg0: i32, %arg1: memref<8x128xf32, #tpu.memory_space<vmem>>, %arg2: memref<128x128xf32, #tpu.memory_space<vmem>>, %arg3: memref<128x128xf32, #tpu.memory_space<vmem>>, %arg4: memref<128x128xf32, #tpu.memory_space<vmem>>, %arg5: memref<1x128xf32, #tpu.memory_space<vmem>>, %arg6: memref<1x128xf32, #tpu.memory_space<vmem>>, %arg7: memref<1x128xf32, #tpu.memory_space<vmem>>, %arg8: memref<1x128xf32, #tpu.memory_space<vmem>>, %arg9: memref<8x128xf32, #tpu.memory_space<vmem>>) attributes {dimension_semantics = [#tpu.dimension_semantics<parallel>], iteration_bounds = array<i64: 1>, scalar_prefetch = 0 : i64, scratch_operands = 0 : i64, tpu.core_type = #tpu.core_type<tc>, window_params = [{transform_indices = @transform_0, window_bounds = array<i64: 8, 128>}, {pipeline_mode = #tpu.pipeline_mode<synchronous>, transform_indices = @transform_1, window_bounds = array<i64: 128, 128>}, {pipeline_mode = #tpu.pipeline_mode<synchronous>, transform_indices = @transform_2, window_bounds = array<i64: 128, 128>}, {pipeline_mode = #tpu.pipeline_mode<synchronous>, transform_indices = @transform_3, window_bounds = array<i64: 128, 128>}, {pipeline_mode = #tpu.pipeline_mode<synchronous>, transform_indices = @transform_4, window_bounds = array<i64: 1, 128>}, {pipeline_mode = #tpu.pipeline_mode<synchronous>, transform_indices = @transform_5, window_bounds = array<i64: 1, 128>}, {pipeline_mode = #tpu.pipeline_mode<synchronous>, transform_indices = @transform_6, window_bounds = array<i64: 1, 128>}, {pipeline_mode = #tpu.pipeline_mode<synchronous>, transform_indices = @transform_7, window_bounds = array<i64: 1, 128>}, {transform_indices = @transform_8, window_bounds = array<i64: 8, 128>}]} {
    %c0 = arith.constant 0 : index
    %c0_0 = arith.constant 0 : index
    %0 = vector.load %arg2[%c0, %c0_0] : memref<128x128xf32, #tpu.memory_space<vmem>>, vector<128x128xf32>
    %c0_1 = arith.constant 0 : index
    %c0_2 = arith.constant 0 : index
    %1 = vector.load %arg3[%c0_1, %c0_2] : memref<128x128xf32, #tpu.memory_space<vmem>>, vector<128x128xf32>
    %c0_3 = arith.constant 0 : index
    %c0_4 = arith.constant 0 : index
    %2 = vector.load %arg4[%c0_3, %c0_4] : memref<128x128xf32, #tpu.memory_space<vmem>>, vector<128x128xf32>
    %c0_5 = arith.constant 0 : index
    %c0_6 = arith.constant 0 : index
    %3 = vector.load %arg5[%c0_5, %c0_6] : memref<1x128xf32, #tpu.memory_space<vmem>>, vector<1x128xf32>
    %c0_7 = arith.constant 0 : index
    %c0_8 = arith.constant 0 : index
    %4 = vector.load %arg6[%c0_7, %c0_8] : memref<1x128xf32, #tpu.memory_space<vmem>>, vector<1x128xf32>
    %c0_9 = arith.constant 0 : index
    %c0_10 = arith.constant 0 : index
    %5 = vector.load %arg7[%c0_9, %c0_10] : memref<1x128xf32, #tpu.memory_space<vmem>>, vector<1x128xf32>
    %c0_11 = arith.constant 0 : index
    %c0_12 = arith.constant 0 : index
    %6 = vector.load %arg8[%c0_11, %c0_12] : memref<1x128xf32, #tpu.memory_space<vmem>>, vector<1x128xf32>
    %c0_13 = arith.constant 0 : index
    %c0_14 = arith.constant 0 : index
    %7 = vector.load %arg1[%c0_13, %c0_14] : memref<8x128xf32, #tpu.memory_space<vmem>>, vector<8x128xf32>
    %cst = arith.constant dense<0.000000e+00> : vector<8x128xf32>
    %8 = tpu.matmul %7, %0, %cst {dimension_numbers = #tpu.dot_dimension_numbers<[1], [0], [0], [1], [0, 0, 1, 1], [], []>} : vector<8x128xf32>, vector<128x128xf32>, vector<8x128xf32> -> vector<8x128xf32>
    %cst_15 = arith.constant 5.000000e-01 : f32
    %9 = vector.broadcast %cst_15 : f32 to vector<8x128xf32>
    %10 = arith.mulf %8, %9 : vector<8x128xf32>
    %cst_16 = arith.constant 1.41421354 : f32
    %11 = vector.broadcast %cst_16 : f32 to vector<8x128xf32>
    %12 = arith.divf %8, %11 : vector<8x128xf32>
    %13 = math.erf %12 : vector<8x128xf32>
    %cst_17 = arith.constant 1.000000e+00 : f32
    %14 = vector.broadcast %cst_17 : f32 to vector<8x128xf32>
    %15 = arith.addf %14, %13 : vector<8x128xf32>
    %16 = arith.mulf %10, %15 : vector<8x128xf32>
    %cst_18 = arith.constant dense<0.000000e+00> : vector<8xf32>
    %17 = vector.multi_reduction <add>, %16, %cst_18 [1] : vector<8x128xf32> to vector<8xf32>
    %18 = vector.shape_cast %17 : vector<8xf32> to vector<8x1xf32>
    %cst_19 = arith.constant 1.562500e-02 : f32
    %19 = vector.broadcast %cst_19 : f32 to vector<8x1xf32>
    %20 = arith.mulf %18, %19 : vector<8x1xf32>
    %21 = vector.broadcast %20 : vector<8x1xf32> to vector<8x128xf32>
    %22 = arith.subf %16, %21 : vector<8x128xf32>
    %23 = arith.mulf %22, %22 : vector<8x128xf32>
    %cst_20 = arith.constant dense<0.000000e+00> : vector<8xf32>
    %24 = vector.multi_reduction <add>, %23, %cst_20 [1] : vector<8x128xf32> to vector<8xf32>
    %25 = vector.shape_cast %24 : vector<8xf32> to vector<8x1xf32>
    %26 = arith.mulf %20, %20 : vector<8x1xf32>
    %cst_21 = arith.constant 6.400000e+01 : f32
    %27 = vector.broadcast %cst_21 : f32 to vector<8x1xf32>
    %28 = arith.mulf %27, %26 : vector<8x1xf32>
    %29 = arith.subf %25, %28 : vector<8x1xf32>
    %cst_22 = arith.constant 1.562500e-02 : f32
    %30 = vector.broadcast %cst_22 : f32 to vector<8x1xf32>
    %31 = arith.mulf %29, %30 : vector<8x1xf32>
    %cst_23 = arith.constant 9.99999974E-6 : f32
    %32 = vector.broadcast %cst_23 : f32 to vector<8x1xf32>
    %33 = arith.addf %31, %32 : vector<8x1xf32>
    %34 = math.rsqrt %33 : vector<8x1xf32>
    %35 = vector.broadcast %34 : vector<8x1xf32> to vector<8x128xf32>
    %36 = arith.mulf %22, %35 : vector<8x128xf32>
    %37 = vector.broadcast %3 : vector<1x128xf32> to vector<8x128xf32>
    %38 = arith.mulf %36, %37 : vector<8x128xf32>
    %39 = vector.broadcast %4 : vector<1x128xf32> to vector<8x128xf32>
    %40 = arith.addf %38, %39 : vector<8x128xf32>
    %cst_24 = arith.constant dense<0.000000e+00> : vector<8x128xf32>
    %41 = tpu.matmul %40, %1, %cst_24 {dimension_numbers = #tpu.dot_dimension_numbers<[1], [0], [0], [1], [0, 0, 1, 1], [], []>} : vector<8x128xf32>, vector<128x128xf32>, vector<8x128xf32> -> vector<8x128xf32>
    %cst_25 = arith.constant 5.000000e-01 : f32
    %42 = vector.broadcast %cst_25 : f32 to vector<8x128xf32>
    %43 = arith.mulf %41, %42 : vector<8x128xf32>
    %cst_26 = arith.constant 1.41421354 : f32
    %44 = vector.broadcast %cst_26 : f32 to vector<8x128xf32>
    %45 = arith.divf %41, %44 : vector<8x128xf32>
    %46 = math.erf %45 : vector<8x128xf32>
    %cst_27 = arith.constant 1.000000e+00 : f32
    %47 = vector.broadcast %cst_27 : f32 to vector<8x128xf32>
    %48 = arith.addf %47, %46 : vector<8x128xf32>
    %49 = arith.mulf %43, %48 : vector<8x128xf32>
    %cst_28 = arith.constant dense<0.000000e+00> : vector<8xf32>
    %50 = vector.multi_reduction <add>, %49, %cst_28 [1] : vector<8x128xf32> to vector<8xf32>
    %51 = vector.shape_cast %50 : vector<8xf32> to vector<8x1xf32>
    %cst_29 = arith.constant 0.020833334 : f32
    %52 = vector.broadcast %cst_29 : f32 to vector<8x1xf32>
    %53 = arith.mulf %51, %52 : vector<8x1xf32>
    %54 = vector.broadcast %53 : vector<8x1xf32> to vector<8x128xf32>
    %55 = arith.subf %49, %54 : vector<8x128xf32>
    %56 = arith.mulf %55, %55 : vector<8x128xf32>
    %cst_30 = arith.constant dense<0.000000e+00> : vector<8xf32>
    %57 = vector.multi_reduction <add>, %56, %cst_30 [1] : vector<8x128xf32> to vector<8xf32>
    %58 = vector.shape_cast %57 : vector<8xf32> to vector<8x1xf32>
    %59 = arith.mulf %53, %53 : vector<8x1xf32>
    %cst_31 = arith.constant 8.000000e+01 : f32
    %60 = vector.broadcast %cst_31 : f32 to vector<8x1xf32>
    %61 = arith.mulf %60, %59 : vector<8x1xf32>
    %62 = arith.subf %58, %61 : vector<8x1xf32>
    %cst_32 = arith.constant 0.020833334 : f32
    %63 = vector.broadcast %cst_32 : f32 to vector<8x1xf32>
    %64 = arith.mulf %62, %63 : vector<8x1xf32>
    %cst_33 = arith.constant 9.99999974E-6 : f32
    %65 = vector.broadcast %cst_33 : f32 to vector<8x1xf32>
    %66 = arith.addf %64, %65 : vector<8x1xf32>
    %67 = math.rsqrt %66 : vector<8x1xf32>
    %68 = vector.broadcast %67 : vector<8x1xf32> to vector<8x128xf32>
    %69 = arith.mulf %55, %68 : vector<8x128xf32>
    %70 = vector.broadcast %5 : vector<1x128xf32> to vector<8x128xf32>
    %71 = arith.mulf %69, %70 : vector<8x128xf32>
    %72 = vector.broadcast %6 : vector<1x128xf32> to vector<8x128xf32>
    %73 = arith.addf %71, %72 : vector<8x128xf32>
    %cst_34 = arith.constant dense<0.000000e+00> : vector<8x128xf32>
    %74 = tpu.matmul %73, %2, %cst_34 {dimension_numbers = #tpu.dot_dimension_numbers<[1], [0], [0], [1], [0, 0, 1, 1], [], []>} : vector<8x128xf32>, vector<128x128xf32>, vector<8x128xf32> -> vector<8x128xf32>
    %c0_35 = arith.constant 0 : index
    %c0_36 = arith.constant 0 : index
    %75 = vector.load %arg9[%c0_35, %c0_36] : memref<8x128xf32, #tpu.memory_space<vmem>>, vector<8x128xf32>
    tpu.vector_store %arg9[%c0_35, %c0_36], %74 {strides = array<i32>} : memref<8x128xf32, #tpu.memory_space<vmem>>, vector<8x128xf32>,
    return
  }
  func.func @transform_0(%arg0: i32) -> (i32, i32) {
    %c0_i32 = arith.constant 0 : i32
    %c0_i32_0 = arith.constant 0 : i32
    return %arg0, %c0_i32 : i32, i32
  }
  func.func @transform_1(%arg0: i32) -> (i32, i32) {
    %c0_i32 = arith.constant 0 : i32
    %c0_i32_0 = arith.constant 0 : i32
    %c0_i32_1 = arith.constant 0 : i32
    return %c0_i32, %c0_i32_0 : i32, i32
  }
  func.func @transform_2(%arg0: i32) -> (i32, i32) {
    %c0_i32 = arith.constant 0 : i32
    %c0_i32_0 = arith.constant 0 : i32
    %c0_i32_1 = arith.constant 0 : i32
    return %c0_i32, %c0_i32_0 : i32, i32
  }
  func.func @transform_3(%arg0: i32) -> (i32, i32) {
    %c0_i32 = arith.constant 0 : i32
    %c0_i32_0 = arith.constant 0 : i32
    %c0_i32_1 = arith.constant 0 : i32
    return %c0_i32, %c0_i32_0 : i32, i32
  }
  func.func @transform_4(%arg0: i32) -> (i32, i32) {
    %c0_i32 = arith.constant 0 : i32
    %c0_i32_0 = arith.constant 0 : i32
    %c0_i32_1 = arith.constant 0 : i32
    return %c0_i32, %c0_i32_0 : i32, i32
  }
  func.func @transform_5(%arg0: i32) -> (i32, i32) {
    %c0_i32 = arith.constant 0 : i32
    %c0_i32_0 = arith.constant 0 : i32
    %c0_i32_1 = arith.constant 0 : i32
    return %c0_i32, %c0_i32_0 : i32, i32
  }
  func.func @transform_6(%arg0: i32) -> (i32, i32) {
    %c0_i32 = arith.constant 0 : i32
    %c0_i32_0 = arith.constant 0 : i32
    %c0_i32_1 = arith.constant 0 : i32
    return %c0_i32, %c0_i32_0 : i32, i32
  }
  func.func @transform_7(%arg0: i32) -> (i32, i32) {
    %c0_i32 = arith.constant 0 : i32
    %c0_i32_0 = arith.constant 0 : i32
    %c0_i32_1 = arith.constant 0 : i32
    return %c0_i32, %c0_i32_0 : i32, i32
  }
  func.func @transform_8(%arg0: i32) -> (i32, i32) {
    %c0_i32 = arith.constant 0 : i32
    %c0_i32_0 = arith.constant 0 : i32
    return %arg0, %c0_i32 : i32, i32
  }
}

module attributes {stable_mosaic.version = 11 : i64} {
  func.func @_fused_mlp_kernel(%arg0: i32, %arg1: memref<8x128xf32, #tpu.memory_space<vmem>>, %arg2: memref<128x128xf32, #tpu.memory_space<vmem>>, %arg3: memref<128x128xf32, #tpu.memory_space<vmem>>, %arg4: memref<128x128xf32, #tpu.memory_space<vmem>>, %arg5: memref<1x128xf32, #tpu.memory_space<vmem>>, %arg6: memref<1x128xf32, #tpu.memory_space<vmem>>, %arg7: memref<1x128xf32, #tpu.memory_space<vmem>>, %arg8: memref<1x128xf32, #tpu.memory_space<vmem>>, %arg9: memref<8x128xf32, #tpu.memory_space<vmem>>) attributes {dimension_semantics = [#tpu.dimension_semantics<parallel>], iteration_bounds = array<i64: 1>, scalar_prefetch = 0 : i64, scratch_operands = 0 : i64, tpu.core_type = #tpu.core_type<tc>, window_params = [{transform_indices = @transform_0, window_bounds = array<i64: 8, 128>}, {pipeline_mode = #tpu.pipeline_mode<synchronous>, transform_indices = @transform_1, window_bounds = array<i64: 128, 128>}, {pipeline_mode = #tpu.pipeline_mode<synchronous>, transform_indices = @transform_2, window_bounds = array<i64: 128, 128>}, {pipeline_mode = #tpu.pipeline_mode<synchronous>, transform_indices = @transform_3, window_bounds = array<i64: 128, 128>}, {pipeline_mode = #tpu.pipeline_mode<synchronous>, transform_indices = @transform_4, window_bounds = array<i64: 1, 128>}, {pipeline_mode = #tpu.pipeline_mode<synchronous>, transform_indices = @transform_5, window_bounds = array<i64: 1, 128>}, {pipeline_mode = #tpu.pipeline_mode<synchronous>, transform_indices = @transform_6, window_bounds = array<i64: 1, 128>}, {pipeline_mode = #tpu.pipeline_mode<synchronous>, transform_indices = @transform_7, window_bounds = array<i64: 1, 128>}, {transform_indices = @transform_8, window_bounds = array<i64: 8, 128>}]} {
    %c0 = arith.constant 0 : index
    %c0_0 = arith.constant 0 : index
    %0 = vector.load %arg2[%c0, %c0_0] : memref<128x128xf32, #tpu.memory_space<vmem>>, vector<128x128xf32>
    %c0_1 = arith.constant 0 : index
    %c0_2 = arith.constant 0 : index
    %1 = vector.load %arg3[%c0_1, %c0_2] : memref<128x128xf32, #tpu.memory_space<vmem>>, vector<128x128xf32>
    %c0_3 = arith.constant 0 : index
    %c0_4 = arith.constant 0 : index
    %2 = vector.load %arg4[%c0_3, %c0_4] : memref<128x128xf32, #tpu.memory_space<vmem>>, vector<128x128xf32>
    %c0_5 = arith.constant 0 : index
    %c0_6 = arith.constant 0 : index
    %3 = vector.load %arg5[%c0_5, %c0_6] : memref<1x128xf32, #tpu.memory_space<vmem>>, vector<1x128xf32>
    %c0_7 = arith.constant 0 : index
    %c0_8 = arith.constant 0 : index
    %4 = vector.load %arg6[%c0_7, %c0_8] : memref<1x128xf32, #tpu.memory_space<vmem>>, vector<1x128xf32>
    %c0_9 = arith.constant 0 : index
    %c0_10 = arith.constant 0 : index
    %5 = vector.load %arg7[%c0_9, %c0_10] : memref<1x128xf32, #tpu.memory_space<vmem>>, vector<1x128xf32>
    %c0_11 = arith.constant 0 : index
    %c0_12 = arith.constant 0 : index
    %6 = vector.load %arg8[%c0_11, %c0_12] : memref<1x128xf32, #tpu.memory_space<vmem>>, vector<1x128xf32>
    %c0_13 = arith.constant 0 : index
    %c0_14 = arith.constant 0 : index
    %7 = vector.load %arg1[%c0_13, %c0_14] : memref<8x128xf32, #tpu.memory_space<vmem>>, vector<8x128xf32>
    %cst = arith.constant dense<0.000000e+00> : vector<8x128xf32>
    %8 = tpu.matmul %7, %0, %cst {dimension_numbers = #tpu.dot_dimension_numbers<[1], [0], [0], [1], [0, 0, 1, 1], [], []>} : vector<8x128xf32>, vector<128x128xf32>, vector<8x128xf32> -> vector<8x128xf32>
    %cst_15 = arith.constant 5.000000e-01 : f32
    %9 = vector.broadcast %cst_15 : f32 to vector<8x128xf32>
    %10 = arith.mulf %8, %9 : vector<8x128xf32>
    %cst_16 = arith.constant 1.41421354 : f32
    %11 = vector.broadcast %cst_16 : f32 to vector<8x128xf32>
    %12 = arith.divf %8, %11 : vector<8x128xf32>
    %13 = math.erf %12 : vector<8x128xf32>
    %cst_17 = arith.constant 1.000000e+00 : f32
    %14 = vector.broadcast %cst_17 : f32 to vector<8x128xf32>
    %15 = arith.addf %14, %13 : vector<8x128xf32>
    %16 = arith.mulf %10, %15 : vector<8x128xf32>
    %cst_18 = arith.constant dense<0.000000e+00> : vector<8xf32>
    %17 = vector.multi_reduction <add>, %16, %cst_18 [1] : vector<8x128xf32> to vector<8xf32>
    %18 = vector.shape_cast %17 : vector<8xf32> to vector<8x1xf32>
    %cst_19 = arith.constant 1.562500e-02 : f32
    %19 = vector.broadcast %cst_19 : f32 to vector<8x1xf32>
    %20 = arith.mulf %18, %19 : vector<8x1xf32>
    %21 = vector.broadcast %20 : vector<8x1xf32> to vector<8x128xf32>
    %22 = arith.subf %16, %21 : vector<8x128xf32>
    %23 = arith.mulf %22, %22 : vector<8x128xf32>
    %cst_20 = arith.constant dense<0.000000e+00> : vector<8xf32>
    %24 = vector.multi_reduction <add>, %23, %cst_20 [1] : vector<8x128xf32> to vector<8xf32>
    %25 = vector.shape_cast %24 : vector<8xf32> to vector<8x1xf32>
    %26 = arith.mulf %20, %20 : vector<8x1xf32>
    %cst_21 = arith.constant 6.400000e+01 : f32
    %27 = vector.broadcast %cst_21 : f32 to vector<8x1xf32>
    %28 = arith.mulf %27, %26 : vector<8x1xf32>
    %29 = arith.subf %25, %28 : vector<8x1xf32>
    %cst_22 = arith.constant 1.562500e-02 : f32
    %30 = vector.broadcast %cst_22 : f32 to vector<8x1xf32>
    %31 = arith.mulf %29, %30 : vector<8x1xf32>
    %cst_23 = arith.constant 9.99999974E-6 : f32
    %32 = vector.broadcast %cst_23 : f32 to vector<8x1xf32>
    %33 = arith.addf %31, %32 : vector<8x1xf32>
    %34 = math.rsqrt %33 : vector<8x1xf32>
    %35 = vector.broadcast %34 : vector<8x1xf32> to vector<8x128xf32>
    %36 = arith.mulf %22, %35 : vector<8x128xf32>
    %37 = vector.broadcast %3 : vector<1x128xf32> to vector<8x128xf32>
    %38 = arith.mulf %36, %37 : vector<8x128xf32>
    %39 = vector.broadcast %4 : vector<1x128xf32> to vector<8x128xf32>
    %40 = arith.addf %38, %39 : vector<8x128xf32>
    %cst_24 = arith.constant dense<0.000000e+00> : vector<8x128xf32>
    %41 = tpu.matmul %40, %1, %cst_24 {dimension_numbers = #tpu.dot_dimension_numbers<[1], [0], [0], [1], [0, 0, 1, 1], [], []>} : vector<8x128xf32>, vector<128x128xf32>, vector<8x128xf32> -> vector<8x128xf32>
    %cst_25 = arith.constant 5.000000e-01 : f32
    %42 = vector.broadcast %cst_25 : f32 to vector<8x128xf32>
    %43 = arith.mulf %41, %42 : vector<8x128xf32>
    %cst_26 = arith.constant 1.41421354 : f32
    %44 = vector.broadcast %cst_26 : f32 to vector<8x128xf32>
    %45 = arith.divf %41, %44 : vector<8x128xf32>
    %46 = math.erf %45 : vector<8x128xf32>
    %cst_27 = arith.constant 1.000000e+00 : f32
    %47 = vector.broadcast %cst_27 : f32 to vector<8x128xf32>
    %48 = arith.addf %47, %46 : vector<8x128xf32>
    %49 = arith.mulf %43, %48 : vector<8x128xf32>
    %cst_28 = arith.constant dense<0.000000e+00> : vector<8xf32>
    %50 = vector.multi_reduction <add>, %49, %cst_28 [1] : vector<8x128xf32> to vector<8xf32>
    %51 = vector.shape_cast %50 : vector<8xf32> to vector<8x1xf32>
    %cst_29 = arith.constant 0.020833334 : f32
    %52 = vector.broadcast %cst_29 : f32 to vector<8x1xf32>
    %53 = arith.mulf %51, %52 : vector<8x1xf32>
    %54 = vector.broadcast %53 : vector<8x1xf32> to vector<8x128xf32>
    %55 = arith.subf %49, %54 : vector<8x128xf32>
    %56 = arith.mulf %55, %55 : vector<8x128xf32>
    %cst_30 = arith.constant dense<0.000000e+00> : vector<8xf32>
    %57 = vector.multi_reduction <add>, %56, %cst_30 [1] : vector<8x128xf32> to vector<8xf32>
    %58 = vector.shape_cast %57 : vector<8xf32> to vector<8x1xf32>
    %59 = arith.mulf %53, %53 : vector<8x1xf32>
    %cst_31 = arith.constant 8.000000e+01 : f32
    %60 = vector.broadcast %cst_31 : f32 to vector<8x1xf32>
    %61 = arith.mulf %60, %59 : vector<8x1xf32>
    %62 = arith.subf %58, %61 : vector<8x1xf32>
    %cst_32 = arith.constant 0.020833334 : f32
    %63 = vector.broadcast %cst_32 : f32 to vector<8x1xf32>
    %64 = arith.mulf %62, %63 : vector<8x1xf32>
    %cst_33 = arith.constant 9.99999974E-6 : f32
    %65 = vector.broadcast %cst_33 : f32 to vector<8x1xf32>
    %66 = arith.addf %64, %65 : vector<8x1xf32>
    %67 = math.rsqrt %66 : vector<8x1xf32>
    %68 = vector.broadcast %67 : vector<8x1xf32> to vector<8x128xf32>
    %69 = arith.mulf %55, %68 : vector<8x128xf32>
    %70 = vector.broadcast %5 : vector<1x128xf32> to vector<8x128xf32>
    %71 = arith.mulf %69, %70 : vector<8x128xf32>
    %72 = vector.broadcast %6 : vector<1x128xf32> to vector<8x128xf32>
    %73 = arith.addf %71, %72 : vector<8x128xf32>
    %cst_34 = arith.constant dense<0.000000e+00> : vector<8x128xf32>
    %74 = tpu.matmul %73, %2, %cst_34 {dimension_numbers = #tpu.dot_dimension_numbers<[1], [0], [0], [1], [0, 0, 1, 1], [], []>} : vector<8x128xf32>, vector<128x128xf32>, vector<8x128xf32> -> vector<8x128xf32>
    %c0_35 = arith.constant 0 : index
    %c0_36 = arith.constant 0 : index
    %75 = vector.load %arg9[%c0_35, %c0_36] : memref<8x128xf32, #tpu.memory_space<vmem>>, vector<8x128xf32>
    tpu.vector_store %arg9[%c0_35, %c0_36], %74 {strides = array<i32>} : memref<8x128xf32, #tpu.memory_space<vmem>>, vector<8x128xf32>,
    return
  }
  func.func @transform_0(%arg0: i32) -> (i32, i32) {
    %c0_i32 = arith.constant 0 : i32
    %c0_i32_0 = arith.constant 0 : i32
    return %arg0, %c0_i32 : i32, i32
  }
  func.func @transform_1(%arg0: i32) -> (i32, i32) {
    %c0_i32 = arith.constant 0 : i32
    %c0_i32_0 = arith.constant 0 : i32
    %c0_i32_1 = arith.constant 0 : i32
    return %c0_i32, %c0_i32_0 : i32, i32
  }
  func.func @transform_2(%arg0: i32) -> (i32, i32) {
    %c0_i32 = arith.constant 0 : i32
    %c0_i32_0 = arith.constant 0 : i32
    %c0_i32_1 = arith.constant 0 : i32
    return %c0_i32, %c0_i32_0 : i32, i32
  }
  func.func @transform_3(%arg0: i32) -> (i32, i32) {
    %c0_i32 = arith.constant 0 : i32
    %c0_i32_0 = arith.constant 0 : i32
    %c0_i32_1 = arith.constant 0 : i32
    return %c0_i32, %c0_i32_0 : i32, i32
  }
  func.func @transform_4(%arg0: i32) -> (i32, i32) {
    %c0_i32 = arith.constant 0 : i32
    %c0_i32_0 = arith.constant 0 : i32
    %c0_i32_1 = arith.constant 0 : i32
    return %c0_i32, %c0_i32_0 : i32, i32
  }
  func.func @transform_5(%arg0: i32) -> (i32, i32) {
    %c0_i32 = arith.constant 0 : i32
    %c0_i32_0 = arith.constant 0 : i32
    %c0_i32_1 = arith.constant 0 : i32
    return %c0_i32, %c0_i32_0 : i32, i32
  }
  func.func @transform_6(%arg0: i32) -> (i32, i32) {
    %c0_i32 = arith.constant 0 : i32
    %c0_i32_0 = arith.constant 0 : i32
    %c0_i32_1 = arith.constant 0 : i32
    return %c0_i32, %c0_i32_0 : i32, i32
  }
  func.func @transform_7(%arg0: i32) -> (i32, i32) {
    %c0_i32 = arith.constant 0 : i32
    %c0_i32_0 = arith.constant 0 : i32
    %c0_i32_1 = arith.constant 0 : i32
    return %c0_i32, %c0_i32_0 : i32, i32
  }
  func.func @transform_8(%arg0: i32) -> (i32, i32) {
    %c0_i32 = arith.constant 0 : i32
    %c0_i32_0 = arith.constant 0 : i32
    return %arg0, %c0_i32 : i32, i32
  }
}

</mosaic_0001>

<llo_original>
// kernel: forward.1
$region0: #{forward.1}
  #allocation0 [shape = 'u32[]', space=smem, size = 0x4, offset = 0x4, fixed_abs, tag = 'smem constant byte address 0x4 - core index']
  #allocation1 [shape = 'u32[144,128]{1,0:T(1,128)}', space=vmem, size = 0x12000, scoped, tag = 'internal scratch']
  %s0 = inlined_call_operand.vmem [shape: f32[8,128], index: 0, kind: input, shape index: {}]
  %s1 = inlined_call_operand.hbm [shape: f32[128,128], index: 1, kind: input, shape index: {}]
  %s2 = inlined_call_operand.hbm [shape: f32[128,128], index: 2, kind: input, shape index: {}]
  %s3 = inlined_call_operand.hbm [shape: f32[128,128], index: 3, kind: input, shape index: {}]
  %s4 = inlined_call_operand.vmem [shape: f32[1,128], index: 4, kind: input, shape index: {}]
  %s5 = inlined_call_operand.vmem [shape: f32[1,128], index: 5, kind: input, shape index: {}]
  %s6 = inlined_call_operand.vmem [shape: f32[1,128], index: 6, kind: input, shape index: {}]
  %s7 = inlined_call_operand.vmem [shape: f32[1,128], index: 7, kind: input, shape index: {}]
  %s8 = inlined_call_operand.hbm [shape: f32[8,128], index: 8, kind: output, shape index: {}]
  %s9 = sld [smem:[#allocation0]]
  $region54: #{forward.1} parent=0
    _
  %s11 = ssub.s32 1, %s9
  %s12 = scalar_select 0, %s11, %s9
  $region1: #{forward.1} parent=0
    #allocation2 [shape = 'u8[65536]{0}', space=vmem, size = 0x10000, scoped, tag = 'input window, operand 1, single buffered']
    #allocation3 [shape = 's32[1]{0}', space=sflag, size = 0x4, scoped, tag = 'scoped memory for forward.1']
    #allocation4 [shape = 's32[1]{0}', space=sflag, size = 0x4, scoped, tag = 'scoped memory for forward.1']
    #allocation5 [shape = 'u8[65536]{0}', space=vmem, size = 0x10000, scoped, tag = 'input window, operand 2, single buffered']
    #allocation6 [shape = 's32[1]{0}', space=sflag, size = 0x4, scoped, tag = 'scoped memory for forward.1']
    #allocation7 [shape = 'u8[65536]{0}', space=vmem, size = 0x10000, scoped, tag = 'input window, operand 3, single buffered']
    #allocation8 [shape = 'u8[4096]{0}', space=vmem, size = 0x1000, scoped, tag = 'output window, operand 0, single buffered']
    %13 = vsyncpa [#allocation3], 0
    %14 = vsyncpa [#allocation6], 0
    %15 = vsyncpa [#allocation4], 0
    // Predicated region
    $region2: #{forward.1} parent=1 // pred_check
      _
    $region3: #{forward.1} parent=1 // pred_check_branch
      %17 = sbr.rel (0) target = $region5
    $region4: #{forward.1} parent=1 // pred_region
      _
    $region5: #{forward.1} parent=1 // pred_fallthru
      _
    // Predicated region
    $region6: #{forward.1} parent=1 // pred_check
      _
    $region7: #{forward.1} parent=1 // pred_check_branch
      %19 = sbr.rel (0) target = $region9
    $region8: #{forward.1} parent=1 // pred_region
      %s21 = ssub.s32 2048, 2048
      %22 = vsyncadd [#allocation3], %s21
      %s23 = sshll.u32 [#allocation2], 4
      %s24 = int_to_ptr.vmem [resolvable:$true] %s23
      %29 = dma.hbm_to_vmem [thread:$0]  %s1, 2048, %s24, [#allocation3], 128, 128, 8
    $region9: #{forward.1} parent=1 // pred_fallthru
      _
    // Predicated region
    $region10: #{forward.1} parent=1 // pred_check
      _
    $region11: #{forward.1} parent=1 // pred_check_branch
      %31 = sbr.rel (0) target = $region13
    $region12: #{forward.1} parent=1 // pred_region
      %s33 = ssub.s32 2048, 2048
      %34 = vsyncadd [#allocation6], %s33
      %s35 = sshll.u32 [#allocation5], 4
      %s36 = int_to_ptr.vmem [resolvable:$true] %s35
      %41 = dma.hbm_to_vmem [thread:$0]  %s2, 2048, %s36, [#allocation6], 128, 128, 8
    $region13: #{forward.1} parent=1 // pred_fallthru
      _
    // Predicated region
    $region14: #{forward.1} parent=1 // pred_check
      _
    $region15: #{forward.1} parent=1 // pred_check_branch
      %43 = sbr.rel (0) target = $region17
    $region16: #{forward.1} parent=1 // pred_region
      %s45 = ssub.s32 2048, 2048
      %46 = vsyncadd [#allocation6], %s45
      %s47 = sshll.u32 [#allocation7], 4
      %s48 = int_to_ptr.vmem [resolvable:$true] %s47
      %53 = dma.hbm_to_vmem [thread:$0]  %s3, 2048, %s48, [#allocation6], 128, 128, 8
    $region17: #{forward.1} parent=1 // pred_fallthru
      _
    // Predicated region
    $region18: #{forward.1} parent=1 // pred_check
      _
    $region19: #{forward.1} parent=1 // pred_check_branch
      %55 = sbr.rel (0) target = $region21
    $region20: #{forward.1} parent=1 // pred_region
      _
    $region21: #{forward.1} parent=1 // pred_fallthru
      _
    // Predicated region
    $region22: #{forward.1} parent=1 // pred_check
      _
    $region23: #{forward.1} parent=1 // pred_check_branch
      %57 = sbr.rel (0) target = $region25
    $region24: #{forward.1} parent=1 // pred_region
      _
    $region25: #{forward.1} parent=1 // pred_fallthru
      _
    // Predicated region
    $region26: #{forward.1} parent=1 // pred_check
      _
    $region27: #{forward.1} parent=1 // pred_check_branch
      %59 = sbr.rel (0) target = $region29
    $region28: #{forward.1} parent=1 // pred_region
      _
    $region29: #{forward.1} parent=1 // pred_fallthru
      _
    // Predicated region
    $region30: #{forward.1} parent=1 // pred_check
      _
    $region31: #{forward.1} parent=1 // pred_check_branch
      %61 = sbr.rel (0) target = $region33
    $region32: #{forward.1} parent=1 // pred_region
      _
    $region33: #{forward.1} parent=1 // pred_fallthru
      _
    // Predicated region
    $region34: #{forward.1} parent=1 // pred_check
      _
    $region35: #{forward.1} parent=1 // pred_check_branch
      %63 = sbr.rel (0) target = $region37
    $region36: #{forward.1} parent=1 // pred_region
      %64 = dma.done [#allocation3], 2048
    $region37: #{forward.1} parent=1 // pred_fallthru
      _
    // Predicated region
    $region38: #{forward.1} parent=1 // pred_check
      _
    $region39: #{forward.1} parent=1 // pred_check_branch
      %66 = sbr.rel (0) target = $region41
    $region40: #{forward.1} parent=1 // pred_region
      %67 = dma.done [#allocation6], 2048
    $region41: #{forward.1} parent=1 // pred_fallthru
      _
    // Predicated region
    $region42: #{forward.1} parent=1 // pred_check
      _
    $region43: #{forward.1} parent=1 // pred_check_branch
      %69 = sbr.rel (0) target = $region45
    $region44: #{forward.1} parent=1 // pred_region
      %70 = dma.done [#allocation6], 2048
    $region45: #{forward.1} parent=1 // pred_fallthru
      _
    %v71 = vld [vmem:[#allocation2] sm:$0xff]
    %v72 = vld [vmem:[#allocation2 + $0x8] sm:$0xff]
    %v73 = vld [vmem:[#allocation2 + $0x10] sm:$0xff]
    %v74 = vld [vmem:[#allocation2 + $0x18] sm:$0xff]
    %v75 = vld [vmem:[#allocation2 + $0x20] sm:$0xff]
    %v76 = vld [vmem:[#allocation2 + $0x28] sm:$0xff]
    %v77 = vld [vmem:[#allocation2 + $0x30] sm:$0xff]
    %v78 = vld [vmem:[#allocation2 + $0x38] sm:$0xff]
    %v79 = vld [vmem:[#allocation2 + $0x40] sm:$0xff]
    %v80 = vld [vmem:[#allocation2 + $0x48] sm:$0xff]
    %v81 = vld [vmem:[#allocation2 + $0x50] sm:$0xff]
    %v82 = vld [vmem:[#allocation2 + $0x58] sm:$0xff]
    %v83 = vld [vmem:[#allocation2 + $0x60] sm:$0xff]
    %v84 = vld [vmem:[#allocation2 + $0x68] sm:$0xff]
    %v85 = vld [vmem:[#allocation2 + $0x70] sm:$0xff]
    %v86 = vld [vmem:[#allocation2 + $0x78] sm:$0xff]
    %v87 = vld [vmem:[#allocation5] sm:$0xff]
    %v88 = vld [vmem:[#allocation5 + $0x8] sm:$0xff]
    %v89 = vld [vmem:[#allocation5 + $0x10] sm:$0xff]
    %v90 = vld [vmem:[#allocation5 + $0x18] sm:$0xff]
    %v91 = vld [vmem:[#allocation5 + $0x20] sm:$0xff]
    %v92 = vld [vmem:[#allocation5 + $0x28] sm:$0xff]
    %v93 = vld [vmem:[#allocation5 + $0x30] sm:$0xff]
    %v94 = vld [vmem:[#allocation5 + $0x38] sm:$0xff]
    %v95 = vld [vmem:[#allocation5 + $0x40] sm:$0xff]
    %v96 = vld [vmem:[#allocation5 + $0x48] sm:$0xff]
    %v97 = vld [vmem:[#allocation5 + $0x50] sm:$0xff]
    %v98 = vld [vmem:[#allocation5 + $0x58] sm:$0xff]
    %v99 = vld [vmem:[#allocation5 + $0x60] sm:$0xff]
    %v100 = vld [vmem:[#allocation5 + $0x68] sm:$0xff]
    %v101 = vld [vmem:[#allocation5 + $0x70] sm:$0xff]
    %v102 = vld [vmem:[#allocation5 + $0x78] sm:$0xff]
    %v103 = vld [vmem:[#allocation7] sm:$0xff]
    %v104 = vld [vmem:[#allocation7 + $0x8] sm:$0xff]
    %v105 = vld [vmem:[#allocation7 + $0x10] sm:$0xff]
    %v106 = vld [vmem:[#allocation7 + $0x18] sm:$0xff]
    %v107 = vld [vmem:[#allocation7 + $0x20] sm:$0xff]
    %v108 = vld [vmem:[#allocation7 + $0x28] sm:$0xff]
    %v109 = vld [vmem:[#allocation7 + $0x30] sm:$0xff]
    %v110 = vld [vmem:[#allocation7 + $0x38] sm:$0xff]
    %v111 = vld [vmem:[#allocation7 + $0x40] sm:$0xff]
    %v112 = vld [vmem:[#allocation7 + $0x48] sm:$0xff]
    %v113 = vld [vmem:[#allocation7 + $0x50] sm:$0xff]
    %v114 = vld [vmem:[#allocation7 + $0x58] sm:$0xff]
    %v115 = vld [vmem:[#allocation7 + $0x60] sm:$0xff]
    %v116 = vld [vmem:[#allocation7 + $0x68] sm:$0xff]
    %v117 = vld [vmem:[#allocation7 + $0x70] sm:$0xff]
    %v118 = vld [vmem:[#allocation7 + $0x78] sm:$0xff]
    %v119 = vld [vmem:[%s4] sm:$0x1]
    %v120 = vld [vmem:[%s5] sm:$0x1]
    %v121 = vld [vmem:[%s6] sm:$0x1]
    %v122 = vld [vmem:[%s7] sm:$0x1]
    %v123 = vld [vmem:[%s0] sm:$0xff]
    %124 = vmatprep.subr.mxu0 0.0
    %125 = vmatpush1.msra.mxu0 %v71
    %126 = vmatprep.subr.mxu0 0.0
    %127 = vmatpush1.msra.mxu0 %v72
    %128 = vmatprep.subr.mxu0 0.0
    %129 = vmatpush1.msra.mxu0 %v73
    %130 = vmatprep.subr.mxu0 0.0
    %131 = vmatpush1.msra.mxu0 %v74
    %132 = vmatprep.subr.mxu0 0.0
    %133 = vmatpush1.msra.mxu0 %v75
    %134 = vmatprep.subr.mxu0 0.0
    %135 = vmatpush1.msra.mxu0 %v76
    %136 = vmatprep.subr.mxu0 0.0
    %137 = vmatpush1.msra.mxu0 %v77
    %138 = vmatprep.subr.mxu0 0.0
    %139 = vmatpush1.msra.mxu0 %v78
    %140 = vmatprep.subr.mxu0 0.0
    %141 = vmatpush1.msra.mxu0 %v79
    %142 = vmatprep.subr.mxu0 0.0
    %143 = vmatpush1.msra.mxu0 %v80
    %144 = vmatprep.subr.mxu0 0.0
    %145 = vmatpush1.msra.mxu0 %v81
    %146 = vmatprep.subr.mxu0 0.0
    %147 = vmatpush1.msra.mxu0 %v82
    %148 = vmatprep.subr.mxu0 0.0
    %149 = vmatpush1.msra.mxu0 %v83
    %150 = vmatprep.subr.mxu0 0.0
    %151 = vmatpush1.msra.mxu0 %v84
    %152 = vmatprep.subr.mxu0 0.0
    %153 = vmatpush1.msra.mxu0 %v85
    %154 = vmatprep.subr.mxu0 0.0
    %155 = vmatpush1.msra.mxu0 %v86
    %156 = vmatprep.subr.mxu0 0.0
    %157 = vmatpush1.msra.mxu0 0.0
    %158 = vmatprep.subr.mxu0 0.0
    %159 = vmatpush1.msra.mxu0 0.0
    %160 = vmatprep.subr.mxu0 0.0
    %161 = vmatpush1.msra.mxu0 0.0
    %162 = vmatprep.subr.mxu0 0.0
    %163 = vmatpush1.msra.mxu0 0.0
    %164 = vmatprep.subr.mxu0 0.0
    %165 = vmatpush1.msra.mxu0 0.0
    %166 = vmatprep.subr.mxu0 0.0
    %167 = vmatpush1.msra.mxu0 0.0
    %168 = vmatprep.subr.mxu0 0.0
    %169 = vmatpush1.msra.mxu0 0.0
    %170 = vmatprep.subr.mxu0 0.0
    %171 = vmatpush1.msra.mxu0 0.0
    %172 = vmatprep.subr.mxu0 0.0
    %173 = vmatpush1.msra.mxu0 0.0
    %174 = vmatprep.subr.mxu0 0.0
    %175 = vmatpush1.msra.mxu0 0.0
    %176 = vmatprep.subr.mxu0 0.0
    %177 = vmatpush1.msra.mxu0 0.0
    %178 = vmatprep.subr.mxu0 0.0
    %179 = vmatpush1.msra.mxu0 0.0
    %180 = vmatprep.subr.mxu0 0.0
    %181 = vmatpush1.msra.mxu0 0.0
    %182 = vmatprep.subr.mxu0 0.0
    %183 = vmatpush1.msra.mxu0 0.0
    %184 = vmatprep.subr.mxu0 0.0
    %185 = vmatpush1.msra.mxu0 0.0
    %186 = vmatprep.subr.mxu0 0.0
    %187 = vmatpush1.msra.mxu0 0.0
    %188 = vmatprep.mubr.f32.mxu0 0.0
    %189 = vmatmul.mubr.f32.gmra.mrb[0].mxu0 %v123
    %v190 = vpop.f32.mrb[0].mxu0
    %v191 = vadd.f32 0.0, %v190
    %v192 = vpop.f32.mrb[0].mxu0
    %193 = vdwg.mxu0
    %v194 = vmul.f32 %v191, 0.5
    %v195 = vrcp.pop 1.4142135
    %v196 = vmul.f32 %v191, %v195
    %v197 = verf.f32.pop %v196
    %v198 = vadd.f32 %v197, 1.0
    %v199 = vmul.f32 %v194, %v198
    %200 = vadd.xlane.f32.xlu0 %v199
    %v201 = vpop.xlane.xlu0 %200
    %v202 = vmul.f32 %v201, 0.015625
    %v203 = vsub.f32 %v199, %v202
    %v204 = vmul.f32 %v203, %v203
    %205 = vadd.xlane.f32.xlu0 %v204
    %v206 = vpop.xlane.xlu0 %205
    %v207 = vmul.f32 %v202, %v202
    %v208 = vmul.f32 %v207, 64.0
    %v209 = vsub.f32 %v206, %v208
    %v210 = vmul.f32 %v209, 0.015625
    %v211 = vadd.f32 %v210, 1e-05
    %v212 = vrsqrt.pop %v211
    %v213 = vmul.f32 %v203, %v212
    %v215 = vlaneseq
    %v216 = vshrl.u32 %v215, 7
    %v217 = vsub.s32 0, %v216
    %v218 = vrot.slane %v119, %v217
    %v220 = vmul.f32 %v213, %v218
    %v222 = vlaneseq
    %v223 = vshrl.u32 %v222, 7
    %v224 = vsub.s32 0, %v223
    %v225 = vrot.slane %v120, %v224
    %v227 = vadd.f32 %v220, %v225
    %228 = vmatprep.subr.mxu0 0.0
    %229 = vmatpush1.msra.mxu0 %v87
    %230 = vmatprep.subr.mxu0 0.0
    %231 = vmatpush1.msra.mxu0 %v88
    %232 = vmatprep.subr.mxu0 0.0
    %233 = vmatpush1.msra.mxu0 %v89
    %234 = vmatprep.subr.mxu0 0.0
    %235 = vmatpush1.msra.mxu0 %v90
    %236 = vmatprep.subr.mxu0 0.0
    %237 = vmatpush1.msra.mxu0 %v91
    %238 = vmatprep.subr.mxu0 0.0
    %239 = vmatpush1.msra.mxu0 %v92
    %240 = vmatprep.subr.mxu0 0.0
    %241 = vmatpush1.msra.mxu0 %v93
    %242 = vmatprep.subr.mxu0 0.0
    %243 = vmatpush1.msra.mxu0 %v94
    %244 = vmatprep.subr.mxu0 0.0
    %245 = vmatpush1.msra.mxu0 %v95
    %246 = vmatprep.subr.mxu0 0.0
    %247 = vmatpush1.msra.mxu0 %v96
    %248 = vmatprep.subr.mxu0 0.0
    %249 = vmatpush1.msra.mxu0 %v97
    %250 = vmatprep.subr.mxu0 0.0
    %251 = vmatpush1.msra.mxu0 %v98
    %252 = vmatprep.subr.mxu0 0.0
    %253 = vmatpush1.msra.mxu0 %v99
    %254 = vmatprep.subr.mxu0 0.0
    %255 = vmatpush1.msra.mxu0 %v100
    %256 = vmatprep.subr.mxu0 0.0
    %257 = vmatpush1.msra.mxu0 %v101
    %258 = vmatprep.subr.mxu0 0.0
    %259 = vmatpush1.msra.mxu0 %v102
    %260 = vmatprep.subr.mxu0 0.0
    %261 = vmatpush1.msra.mxu0 0.0
    %262 = vmatprep.subr.mxu0 0.0
    %263 = vmatpush1.msra.mxu0 0.0
    %264 = vmatprep.subr.mxu0 0.0
    %265 = vmatpush1.msra.mxu0 0.0
    %266 = vmatprep.subr.mxu0 0.0
    %267 = vmatpush1.msra.mxu0 0.0
    %268 = vmatprep.subr.mxu0 0.0
    %269 = vmatpush1.msra.mxu0 0.0
    %270 = vmatprep.subr.mxu0 0.0
    %271 = vmatpush1.msra.mxu0 0.0
    %272 = vmatprep.subr.mxu0 0.0
    %273 = vmatpush1.msra.mxu0 0.0
    %274 = vmatprep.subr.mxu0 0.0
    %275 = vmatpush1.msra.mxu0 0.0
    %276 = vmatprep.subr.mxu0 0.0
    %277 = vmatpush1.msra.mxu0 0.0
    %278 = vmatprep.subr.mxu0 0.0
    %279 = vmatpush1.msra.mxu0 0.0
    %280 = vmatprep.subr.mxu0 0.0
    %281 = vmatpush1.msra.mxu0 0.0
    %282 = vmatprep.subr.mxu0 0.0
    %283 = vmatpush1.msra.mxu0 0.0
    %284 = vmatprep.subr.mxu0 0.0
    %285 = vmatpush1.msra.mxu0 0.0
    %286 = vmatprep.subr.mxu0 0.0
    %287 = vmatpush1.msra.mxu0 0.0
    %288 = vmatprep.subr.mxu0 0.0
    %289 = vmatpush1.msra.mxu0 0.0
    %290 = vmatprep.subr.mxu0 0.0
    %291 = vmatpush1.msra.mxu0 0.0
    %292 = vmatprep.mubr.f32.mxu0 0.0
    %293 = vmatmul.mubr.f32.gmra.mrb[0].mxu0 %v227
    %v294 = vpop.f32.mrb[0].mxu0
    %v295 = vadd.f32 0.0, %v294
    %v296 = vpop.f32.mrb[0].mxu0
    %297 = vdwg.mxu0
    %v298 = vmul.f32 %v295, 0.5
    %v299 = vmul.f32 %v295, %v195
    %v300 = verf.f32.pop %v299
    %v301 = vadd.f32 %v300, 1.0
    %v302 = vmul.f32 %v298, %v301
    %303 = vadd.xlane.f32.xlu0 %v302
    %v304 = vpop.xlane.xlu0 %303
    %v305 = vmul.f32 %v304, 0.020833334
    %v306 = vsub.f32 %v302, %v305
    %v307 = vmul.f32 %v306, %v306
    %308 = vadd.xlane.f32.xlu0 %v307
    %v309 = vpop.xlane.xlu0 %308
    %v310 = vmul.f32 %v305, %v305
    %v311 = vmul.f32 %v310, 80.0
    %v312 = vsub.f32 %v309, %v311
    %v313 = vmul.f32 %v312, 0.020833334
    %v314 = vadd.f32 %v313, 1e-05
    %v315 = vrsqrt.pop %v314
    %v316 = vmul.f32 %v306, %v315
    %v318 = vlaneseq
    %v319 = vshrl.u32 %v318, 7
    %v320 = vsub.s32 0, %v319
    %v321 = vrot.slane %v121, %v320
    %v323 = vmul.f32 %v316, %v321
    %v325 = vlaneseq
    %v326 = vshrl.u32 %v325, 7
    %v327 = vsub.s32 0, %v326
    %v328 = vrot.slane %v122, %v327
    %v330 = vadd.f32 %v323, %v328
    %331 = vmatprep.subr.mxu0 0.0
    %332 = vmatpush1.msra.mxu0 %v103
    %333 = vmatprep.subr.mxu0 0.0
    %334 = vmatpush1.msra.mxu0 %v104
    %335 = vmatprep.subr.mxu0 0.0
    %336 = vmatpush1.msra.mxu0 %v105
    %337 = vmatprep.subr.mxu0 0.0
    %338 = vmatpush1.msra.mxu0 %v106
    %339 = vmatprep.subr.mxu0 0.0
    %340 = vmatpush1.msra.mxu0 %v107
    %341 = vmatprep.subr.mxu0 0.0
    %342 = vmatpush1.msra.mxu0 %v108
    %343 = vmatprep.subr.mxu0 0.0
    %344 = vmatpush1.msra.mxu0 %v109
    %345 = vmatprep.subr.mxu0 0.0
    %346 = vmatpush1.msra.mxu0 %v110
    %347 = vmatprep.subr.mxu0 0.0
    %348 = vmatpush1.msra.mxu0 %v111
    %349 = vmatprep.subr.mxu0 0.0
    %350 = vmatpush1.msra.mxu0 %v112
    %351 = vmatprep.subr.mxu0 0.0
    %352 = vmatpush1.msra.mxu0 %v113
    %353 = vmatprep.subr.mxu0 0.0
    %354 = vmatpush1.msra.mxu0 %v114
    %355 = vmatprep.subr.mxu0 0.0
    %356 = vmatpush1.msra.mxu0 %v115
    %357 = vmatprep.subr.mxu0 0.0
    %358 = vmatpush1.msra.mxu0 %v116
    %359 = vmatprep.subr.mxu0 0.0
    %360 = vmatpush1.msra.mxu0 %v117
    %361 = vmatprep.subr.mxu0 0.0
    %362 = vmatpush1.msra.mxu0 %v118
    %363 = vmatprep.subr.mxu0 0.0
    %364 = vmatpush1.msra.mxu0 0.0
    %365 = vmatprep.subr.mxu0 0.0
    %366 = vmatpush1.msra.mxu0 0.0
    %367 = vmatprep.subr.mxu0 0.0
    %368 = vmatpush1.msra.mxu0 0.0
    %369 = vmatprep.subr.mxu0 0.0
    %370 = vmatpush1.msra.mxu0 0.0
    %371 = vmatprep.subr.mxu0 0.0
    %372 = vmatpush1.msra.mxu0 0.0
    %373 = vmatprep.subr.mxu0 0.0
    %374 = vmatpush1.msra.mxu0 0.0
    %375 = vmatprep.subr.mxu0 0.0
    %376 = vmatpush1.msra.mxu0 0.0
    %377 = vmatprep.subr.mxu0 0.0
    %378 = vmatpush1.msra.mxu0 0.0
    %379 = vmatprep.subr.mxu0 0.0
    %380 = vmatpush1.msra.mxu0 0.0
    %381 = vmatprep.subr.mxu0 0.0
    %382 = vmatpush1.msra.mxu0 0.0
    %383 = vmatprep.subr.mxu0 0.0
    %384 = vmatpush1.msra.mxu0 0.0
    %385 = vmatprep.subr.mxu0 0.0
    %386 = vmatpush1.msra.mxu0 0.0
    %387 = vmatprep.subr.mxu0 0.0
    %388 = vmatpush1.msra.mxu0 0.0
    %389 = vmatprep.subr.mxu0 0.0
    %390 = vmatpush1.msra.mxu0 0.0
    %391 = vmatprep.subr.mxu0 0.0
    %392 = vmatpush1.msra.mxu0 0.0
    %393 = vmatprep.subr.mxu0 0.0
    %394 = vmatpush1.msra.mxu0 0.0
    %395 = vmatprep.mubr.f32.mxu0 0.0
    %396 = vmatmul.mubr.f32.gmra.mrb[0].mxu0 %v330
    %v397 = vpop.f32.mrb[0].mxu0
    %v398 = vadd.f32 0.0, %v397
    %v399 = vpop.f32.mrb[0].mxu0
    %400 = vdwg.mxu0
    %401 = vst [vmem:[#allocation8] sm:$0xff] %v398
    // Predicated region
    $region46: #{forward.1} parent=1 // pred_check
      _
    $region47: #{forward.1} parent=1 // pred_check_branch
      %403 = sbr.rel (0) target = $region49
    $region48: #{forward.1} parent=1 // pred_region
      %s405 = ssub.s32 128, 128
      %406 = vsyncadd [#allocation4], %s405
      %s408 = sshll.u32 [#allocation8], 4
      %s409 = int_to_ptr.vmem [resolvable:$true] %s408
      %411 = dma.vmem_to_hbm [thread:$0]  %s409, 128, %s8, [#allocation4]
    $region49: #{forward.1} parent=1 // pred_fallthru
      _
    // Predicated region
    $region50: #{forward.1} parent=1 // pred_check
      _
    $region51: #{forward.1} parent=1 // pred_check_branch
      %413 = sbr.rel (0) target = $region53
    $region52: #{forward.1} parent=1 // pred_region
      %414 = dma.done [#allocation4], 128
    $region53: #{forward.1} parent=1 // pred_fallthru
      _
    %415 = vsyncpa [#allocation3], 1
    %416 = vsyncpa [#allocation6], 1
    %417 = vsyncpa [#allocation4], 1

// kernel: forward.1
$region0: #{forward.1}
  #allocation0 [shape = 'u32[]', space=smem, size = 0x4, offset = 0x4, fixed_abs, tag = 'smem constant byte address 0x4 - core index']
  #allocation1 [shape = 'u32[144,128]{1,0:T(1,128)}', space=vmem, size = 0x12000, scoped, tag = 'internal scratch']
  %s0 = inlined_call_operand.vmem [shape: f32[8,128], index: 0, kind: input, shape index: {}]
  %s1 = inlined_call_operand.hbm [shape: f32[128,128], index: 1, kind: input, shape index: {}]
  %s2 = inlined_call_operand.hbm [shape: f32[128,128], index: 2, kind: input, shape index: {}]
  %s3 = inlined_call_operand.hbm [shape: f32[128,128], index: 3, kind: input, shape index: {}]
  %s4 = inlined_call_operand.vmem [shape: f32[1,128], index: 4, kind: input, shape index: {}]
  %s5 = inlined_call_operand.vmem [shape: f32[1,128], index: 5, kind: input, shape index: {}]
  %s6 = inlined_call_operand.vmem [shape: f32[1,128], index: 6, kind: input, shape index: {}]
  %s7 = inlined_call_operand.vmem [shape: f32[1,128], index: 7, kind: input, shape index: {}]
  %s8 = inlined_call_operand.hbm [shape: f32[8,128], index: 8, kind: output, shape index: {}]
  %s9 = sld [smem:[#allocation0]]
  $region54: #{forward.1} parent=0
    _
  %s11 = ssub.s32 1, %s9
  %s12 = scalar_select 0, %s11, %s9
  $region1: #{forward.1} parent=0
    #allocation2 [shape = 'u8[65536]{0}', space=vmem, size = 0x10000, scoped, tag = 'input window, operand 1, single buffered']
    #allocation3 [shape = 's32[1]{0}', space=sflag, size = 0x4, scoped, tag = 'scoped memory for forward.1']
    #allocation4 [shape = 's32[1]{0}', space=sflag, size = 0x4, scoped, tag = 'scoped memory for forward.1']
    #allocation5 [shape = 'u8[65536]{0}', space=vmem, size = 0x10000, scoped, tag = 'input window, operand 2, single buffered']
    #allocation6 [shape = 's32[1]{0}', space=sflag, size = 0x4, scoped, tag = 'scoped memory for forward.1']
    #allocation7 [shape = 'u8[65536]{0}', space=vmem, size = 0x10000, scoped, tag = 'input window, operand 3, single buffered']
    #allocation8 [shape = 'u8[4096]{0}', space=vmem, size = 0x1000, scoped, tag = 'output window, operand 0, single buffered']
    %13 = vsyncpa [#allocation3], 0
    %14 = vsyncpa [#allocation6], 0
    %15 = vsyncpa [#allocation4], 0
    // Predicated region
    $region2: #{forward.1} parent=1 // pred_check
      _
    $region3: #{forward.1} parent=1 // pred_check_branch
      %17 = sbr.rel (0) target = $region5
    $region4: #{forward.1} parent=1 // pred_region
      _
    $region5: #{forward.1} parent=1 // pred_fallthru
      _
    // Predicated region
    $region6: #{forward.1} parent=1 // pred_check
      _
    $region7: #{forward.1} parent=1 // pred_check_branch
      %19 = sbr.rel (0) target = $region9
    $region8: #{forward.1} parent=1 // pred_region
      %s21 = ssub.s32 2048, 2048
      %22 = vsyncadd [#allocation3], %s21
      %s23 = sshll.u32 [#allocation2], 4
      %s24 = int_to_ptr.vmem [resolvable:$true] %s23
      %29 = dma.hbm_to_vmem [thread:$0]  %s1, 2048, %s24, [#allocation3], 128, 128, 8
    $region9: #{forward.1} parent=1 // pred_fallthru
      _
    // Predicated region
    $region10: #{forward.1} parent=1 // pred_check
      _
    $region11: #{forward.1} parent=1 // pred_check_branch
      %31 = sbr.rel (0) target = $region13
    $region12: #{forward.1} parent=1 // pred_region
      %s33 = ssub.s32 2048, 2048
      %34 = vsyncadd [#allocation6], %s33
      %s35 = sshll.u32 [#allocation5], 4
      %s36 = int_to_ptr.vmem [resolvable:$true] %s35
      %41 = dma.hbm_to_vmem [thread:$0]  %s2, 2048, %s36, [#allocation6], 128, 128, 8
    $region13: #{forward.1} parent=1 // pred_fallthru
      _
    // Predicated region
    $region14: #{forward.1} parent=1 // pred_check
      _
    $region15: #{forward.1} parent=1 // pred_check_branch
      %43 = sbr.rel (0) target = $region17
    $region16: #{forward.1} parent=1 // pred_region
      %s45 = ssub.s32 2048, 2048
      %46 = vsyncadd [#allocation6], %s45
      %s47 = sshll.u32 [#allocation7], 4
      %s48 = int_to_ptr.vmem [resolvable:$true] %s47
      %53 = dma.hbm_to_vmem [thread:$0]  %s3, 2048, %s48, [#allocation6], 128, 128, 8
    $region17: #{forward.1} parent=1 // pred_fallthru
      _
    // Predicated region
    $region18: #{forward.1} parent=1 // pred_check
      _
    $region19: #{forward.1} parent=1 // pred_check_branch
      %55 = sbr.rel (0) target = $region21
    $region20: #{forward.1} parent=1 // pred_region
      _
    $region21: #{forward.1} parent=1 // pred_fallthru
      _
    // Predicated region
    $region22: #{forward.1} parent=1 // pred_check
      _
    $region23: #{forward.1} parent=1 // pred_check_branch
      %57 = sbr.rel (0) target = $region25
    $region24: #{forward.1} parent=1 // pred_region
      _
    $region25: #{forward.1} parent=1 // pred_fallthru
      _
    // Predicated region
    $region26: #{forward.1} parent=1 // pred_check
      _
    $region27: #{forward.1} parent=1 // pred_check_branch
      %59 = sbr.rel (0) target = $region29
    $region28: #{forward.1} parent=1 // pred_region
      _
    $region29: #{forward.1} parent=1 // pred_fallthru
      _
    // Predicated region
    $region30: #{forward.1} parent=1 // pred_check
      _
    $region31: #{forward.1} parent=1 // pred_check_branch
      %61 = sbr.rel (0) target = $region33
    $region32: #{forward.1} parent=1 // pred_region
      _
    $region33: #{forward.1} parent=1 // pred_fallthru
      _
    // Predicated region
    $region34: #{forward.1} parent=1 // pred_check
      _
    $region35: #{forward.1} parent=1 // pred_check_branch
      %63 = sbr.rel (0) target = $region37
    $region36: #{forward.1} parent=1 // pred_region
      %64 = dma.done [#allocation3], 2048
    $region37: #{forward.1} parent=1 // pred_fallthru
      _
    // Predicated region
    $region38: #{forward.1} parent=1 // pred_check
      _
    $region39: #{forward.1} parent=1 // pred_check_branch
      %66 = sbr.rel (0) target = $region41
    $region40: #{forward.1} parent=1 // pred_region
      %67 = dma.done [#allocation6], 2048
    $region41: #{forward.1} parent=1 // pred_fallthru
      _
    // Predicated region
    $region42: #{forward.1} parent=1 // pred_check
      _
    $region43: #{forward.1} parent=1 // pred_check_branch
      %69 = sbr.rel (0) target = $region45
    $region44: #{forward.1} parent=1 // pred_region
      %70 = dma.done [#allocation6], 2048
    $region45: #{forward.1} parent=1 // pred_fallthru
      _
    %v71 = vld [vmem:[#allocation2] sm:$0xff]
    %v72 = vld [vmem:[#allocation2 + $0x8] sm:$0xff]
    %v73 = vld [vmem:[#allocation2 + $0x10] sm:$0xff]
    %v74 = vld [vmem:[#allocation2 + $0x18] sm:$0xff]
    %v75 = vld [vmem:[#allocation2 + $0x20] sm:$0xff]
    %v76 = vld [vmem:[#allocation2 + $0x28] sm:$0xff]
    %v77 = vld [vmem:[#allocation2 + $0x30] sm:$0xff]
    %v78 = vld [vmem:[#allocation2 + $0x38] sm:$0xff]
    %v79 = vld [vmem:[#allocation2 + $0x40] sm:$0xff]
    %v80 = vld [vmem:[#allocation2 + $0x48] sm:$0xff]
    %v81 = vld [vmem:[#allocation2 + $0x50] sm:$0xff]
    %v82 = vld [vmem:[#allocation2 + $0x58] sm:$0xff]
    %v83 = vld [vmem:[#allocation2 + $0x60] sm:$0xff]
    %v84 = vld [vmem:[#allocation2 + $0x68] sm:$0xff]
    %v85 = vld [vmem:[#allocation2 + $0x70] sm:$0xff]
    %v86 = vld [vmem:[#allocation2 + $0x78] sm:$0xff]
    %v87 = vld [vmem:[#allocation5] sm:$0xff]
    %v88 = vld [vmem:[#allocation5 + $0x8] sm:$0xff]
    %v89 = vld [vmem:[#allocation5 + $0x10] sm:$0xff]
    %v90 = vld [vmem:[#allocation5 + $0x18] sm:$0xff]
    %v91 = vld [vmem:[#allocation5 + $0x20] sm:$0xff]
    %v92 = vld [vmem:[#allocation5 + $0x28] sm:$0xff]
    %v93 = vld [vmem:[#allocation5 + $0x30] sm:$0xff]
    %v94 = vld [vmem:[#allocation5 + $0x38] sm:$0xff]
    %v95 = vld [vmem:[#allocation5 + $0x40] sm:$0xff]
    %v96 = vld [vmem:[#allocation5 + $0x48] sm:$0xff]
    %v97 = vld [vmem:[#allocation5 + $0x50] sm:$0xff]
    %v98 = vld [vmem:[#allocation5 + $0x58] sm:$0xff]
    %v99 = vld [vmem:[#allocation5 + $0x60] sm:$0xff]
    %v100 = vld [vmem:[#allocation5 + $0x68] sm:$0xff]
    %v101 = vld [vmem:[#allocation5 + $0x70] sm:$0xff]
    %v102 = vld [vmem:[#allocation5 + $0x78] sm:$0xff]
    %v103 = vld [vmem:[#allocation7] sm:$0xff]
    %v104 = vld [vmem:[#allocation7 + $0x8] sm:$0xff]
    %v105 = vld [vmem:[#allocation7 + $0x10] sm:$0xff]
    %v106 = vld [vmem:[#allocation7 + $0x18] sm:$0xff]
    %v107 = vld [vmem:[#allocation7 + $0x20] sm:$0xff]
    %v108 = vld [vmem:[#allocation7 + $0x28] sm:$0xff]
    %v109 = vld [vmem:[#allocation7 + $0x30] sm:$0xff]
    %v110 = vld [vmem:[#allocation7 + $0x38] sm:$0xff]
    %v111 = vld [vmem:[#allocation7 + $0x40] sm:$0xff]
    %v112 = vld [vmem:[#allocation7 + $0x48] sm:$0xff]
    %v113 = vld [vmem:[#allocation7 + $0x50] sm:$0xff]
    %v114 = vld [vmem:[#allocation7 + $0x58] sm:$0xff]
    %v115 = vld [vmem:[#allocation7 + $0x60] sm:$0xff]
    %v116 = vld [vmem:[#allocation7 + $0x68] sm:$0xff]
    %v117 = vld [vmem:[#allocation7 + $0x70] sm:$0xff]
    %v118 = vld [vmem:[#allocation7 + $0x78] sm:$0xff]
    %v119 = vld [vmem:[%s4] sm:$0x1]
    %v120 = vld [vmem:[%s5] sm:$0x1]
    %v121 = vld [vmem:[%s6] sm:$0x1]
    %v122 = vld [vmem:[%s7] sm:$0x1]
    %v123 = vld [vmem:[%s0] sm:$0xff]
    %124 = vmatprep.subr.mxu0 0.0
    %125 = vmatpush1.msra.mxu0 %v71
    %126 = vmatprep.subr.mxu0 0.0
    %127 = vmatpush1.msra.mxu0 %v72
    %128 = vmatprep.subr.mxu0 0.0
    %129 = vmatpush1.msra.mxu0 %v73
    %130 = vmatprep.subr.mxu0 0.0
    %131 = vmatpush1.msra.mxu0 %v74
    %132 = vmatprep.subr.mxu0 0.0
    %133 = vmatpush1.msra.mxu0 %v75
    %134 = vmatprep.subr.mxu0 0.0
    %135 = vmatpush1.msra.mxu0 %v76
    %136 = vmatprep.subr.mxu0 0.0
    %137 = vmatpush1.msra.mxu0 %v77
    %138 = vmatprep.subr.mxu0 0.0
    %139 = vmatpush1.msra.mxu0 %v78
    %140 = vmatprep.subr.mxu0 0.0
    %141 = vmatpush1.msra.mxu0 %v79
    %142 = vmatprep.subr.mxu0 0.0
    %143 = vmatpush1.msra.mxu0 %v80
    %144 = vmatprep.subr.mxu0 0.0
    %145 = vmatpush1.msra.mxu0 %v81
    %146 = vmatprep.subr.mxu0 0.0
    %147 = vmatpush1.msra.mxu0 %v82
    %148 = vmatprep.subr.mxu0 0.0
    %149 = vmatpush1.msra.mxu0 %v83
    %150 = vmatprep.subr.mxu0 0.0
    %151 = vmatpush1.msra.mxu0 %v84
    %152 = vmatprep.subr.mxu0 0.0
    %153 = vmatpush1.msra.mxu0 %v85
    %154 = vmatprep.subr.mxu0 0.0
    %155 = vmatpush1.msra.mxu0 %v86
    %156 = vmatprep.subr.mxu0 0.0
    %157 = vmatpush1.msra.mxu0 0.0
    %158 = vmatprep.subr.mxu0 0.0
    %159 = vmatpush1.msra.mxu0 0.0
    %160 = vmatprep.subr.mxu0 0.0
    %161 = vmatpush1.msra.mxu0 0.0
    %162 = vmatprep.subr.mxu0 0.0
    %163 = vmatpush1.msra.mxu0 0.0
    %164 = vmatprep.subr.mxu0 0.0
    %165 = vmatpush1.msra.mxu0 0.0
    %166 = vmatprep.subr.mxu0 0.0
    %167 = vmatpush1.msra.mxu0 0.0
    %168 = vmatprep.subr.mxu0 0.0
    %169 = vmatpush1.msra.mxu0 0.0
    %170 = vmatprep.subr.mxu0 0.0
    %171 = vmatpush1.msra.mxu0 0.0
    %172 = vmatprep.subr.mxu0 0.0
    %173 = vmatpush1.msra.mxu0 0.0
    %174 = vmatprep.subr.mxu0 0.0
    %175 = vmatpush1.msra.mxu0 0.0
    %176 = vmatprep.subr.mxu0 0.0
    %177 = vmatpush1.msra.mxu0 0.0
    %178 = vmatprep.subr.mxu0 0.0
    %179 = vmatpush1.msra.mxu0 0.0
    %180 = vmatprep.subr.mxu0 0.0
    %181 = vmatpush1.msra.mxu0 0.0
    %182 = vmatprep.subr.mxu0 0.0
    %183 = vmatpush1.msra.mxu0 0.0
    %184 = vmatprep.subr.mxu0 0.0
    %185 = vmatpush1.msra.mxu0 0.0
    %186 = vmatprep.subr.mxu0 0.0
    %187 = vmatpush1.msra.mxu0 0.0
    %188 = vmatprep.mubr.f32.mxu0 0.0
    %189 = vmatmul.mubr.f32.gmra.mrb[0].mxu0 %v123
    %v190 = vpop.f32.mrb[0].mxu0
    %v191 = vadd.f32 0.0, %v190
    %v192 = vpop.f32.mrb[0].mxu0
    %193 = vdwg.mxu0
    %v194 = vmul.f32 %v191, 0.5
    %v195 = vrcp.pop 1.4142135
    %v196 = vmul.f32 %v191, %v195
    %v197 = verf.f32.pop %v196
    %v198 = vadd.f32 %v197, 1.0
    %v199 = vmul.f32 %v194, %v198
    %200 = vadd.xlane.f32.xlu0 %v199
    %v201 = vpop.xlane.xlu0 %200
    %v202 = vmul.f32 %v201, 0.015625
    %v203 = vsub.f32 %v199, %v202
    %v204 = vmul.f32 %v203, %v203
    %205 = vadd.xlane.f32.xlu0 %v204
    %v206 = vpop.xlane.xlu0 %205
    %v207 = vmul.f32 %v202, %v202
    %v208 = vmul.f32 %v207, 64.0
    %v209 = vsub.f32 %v206, %v208
    %v210 = vmul.f32 %v209, 0.015625
    %v211 = vadd.f32 %v210, 1e-05
    %v212 = vrsqrt.pop %v211
    %v213 = vmul.f32 %v203, %v212
    %v215 = vlaneseq
    %v216 = vshrl.u32 %v215, 7
    %v217 = vsub.s32 0, %v216
    %v218 = vrot.slane %v119, %v217
    %v220 = vmul.f32 %v213, %v218
    %v222 = vlaneseq
    %v223 = vshrl.u32 %v222, 7
    %v224 = vsub.s32 0, %v223
    %v225 = vrot.slane %v120, %v224
    %v227 = vadd.f32 %v220, %v225
    %228 = vmatprep.subr.mxu0 0.0
    %229 = vmatpush1.msra.mxu0 %v87
    %230 = vmatprep.subr.mxu0 0.0
    %231 = vmatpush1.msra.mxu0 %v88
    %232 = vmatprep.subr.mxu0 0.0
    %233 = vmatpush1.msra.mxu0 %v89
    %234 = vmatprep.subr.mxu0 0.0
    %235 = vmatpush1.msra.mxu0 %v90
    %236 = vmatprep.subr.mxu0 0.0
    %237 = vmatpush1.msra.mxu0 %v91
    %238 = vmatprep.subr.mxu0 0.0
    %239 = vmatpush1.msra.mxu0 %v92
    %240 = vmatprep.subr.mxu0 0.0
    %241 = vmatpush1.msra.mxu0 %v93
    %242 = vmatprep.subr.mxu0 0.0
    %243 = vmatpush1.msra.mxu0 %v94
    %244 = vmatprep.subr.mxu0 0.0
    %245 = vmatpush1.msra.mxu0 %v95
    %246 = vmatprep.subr.mxu0 0.0
    %247 = vmatpush1.msra.mxu0 %v96
    %248 = vmatprep.subr.mxu0 0.0
    %249 = vmatpush1.msra.mxu0 %v97
    %250 = vmatprep.subr.mxu0 0.0
    %251 = vmatpush1.msra.mxu0 %v98
    %252 = vmatprep.subr.mxu0 0.0
    %253 = vmatpush1.msra.mxu0 %v99
    %254 = vmatprep.subr.mxu0 0.0
    %255 = vmatpush1.msra.mxu0 %v100
    %256 = vmatprep.subr.mxu0 0.0
    %257 = vmatpush1.msra.mxu0 %v101
    %258 = vmatprep.subr.mxu0 0.0
    %259 = vmatpush1.msra.mxu0 %v102
    %260 = vmatprep.subr.mxu0 0.0
    %261 = vmatpush1.msra.mxu0 0.0
    %262 = vmatprep.subr.mxu0 0.0
    %263 = vmatpush1.msra.mxu0 0.0
    %264 = vmatprep.subr.mxu0 0.0
    %265 = vmatpush1.msra.mxu0 0.0
    %266 = vmatprep.subr.mxu0 0.0
    %267 = vmatpush1.msra.mxu0 0.0
    %268 = vmatprep.subr.mxu0 0.0
    %269 = vmatpush1.msra.mxu0 0.0
    %270 = vmatprep.subr.mxu0 0.0
    %271 = vmatpush1.msra.mxu0 0.0
    %272 = vmatprep.subr.mxu0 0.0
    %273 = vmatpush1.msra.mxu0 0.0
    %274 = vmatprep.subr.mxu0 0.0
    %275 = vmatpush1.msra.mxu0 0.0
    %276 = vmatprep.subr.mxu0 0.0
    %277 = vmatpush1.msra.mxu0 0.0
    %278 = vmatprep.subr.mxu0 0.0
    %279 = vmatpush1.msra.mxu0 0.0
    %280 = vmatprep.subr.mxu0 0.0
    %281 = vmatpush1.msra.mxu0 0.0
    %282 = vmatprep.subr.mxu0 0.0
    %283 = vmatpush1.msra.mxu0 0.0
    %284 = vmatprep.subr.mxu0 0.0
    %285 = vmatpush1.msra.mxu0 0.0
    %286 = vmatprep.subr.mxu0 0.0
    %287 = vmatpush1.msra.mxu0 0.0
    %288 = vmatprep.subr.mxu0 0.0
    %289 = vmatpush1.msra.mxu0 0.0
    %290 = vmatprep.subr.mxu0 0.0
    %291 = vmatpush1.msra.mxu0 0.0
    %292 = vmatprep.mubr.f32.mxu0 0.0
    %293 = vmatmul.mubr.f32.gmra.mrb[0].mxu0 %v227
    %v294 = vpop.f32.mrb[0].mxu0
    %v295 = vadd.f32 0.0, %v294
    %v296 = vpop.f32.mrb[0].mxu0
    %297 = vdwg.mxu0
    %v298 = vmul.f32 %v295, 0.5
    %v299 = vmul.f32 %v295, %v195
    %v300 = verf.f32.pop %v299
    %v301 = vadd.f32 %v300, 1.0
    %v302 = vmul.f32 %v298, %v301
    %303 = vadd.xlane.f32.xlu0 %v302
    %v304 = vpop.xlane.xlu0 %303
    %v305 = vmul.f32 %v304, 0.020833334
    %v306 = vsub.f32 %v302, %v305
    %v307 = vmul.f32 %v306, %v306
    %308 = vadd.xlane.f32.xlu0 %v307
    %v309 = vpop.xlane.xlu0 %308
    %v310 = vmul.f32 %v305, %v305
    %v311 = vmul.f32 %v310, 80.0
    %v312 = vsub.f32 %v309, %v311
    %v313 = vmul.f32 %v312, 0.020833334
    %v314 = vadd.f32 %v313, 1e-05
    %v315 = vrsqrt.pop %v314
    %v316 = vmul.f32 %v306, %v315
    %v318 = vlaneseq
    %v319 = vshrl.u32 %v318, 7
    %v320 = vsub.s32 0, %v319
    %v321 = vrot.slane %v121, %v320
    %v323 = vmul.f32 %v316, %v321
    %v325 = vlaneseq
    %v326 = vshrl.u32 %v325, 7
    %v327 = vsub.s32 0, %v326
    %v328 = vrot.slane %v122, %v327
    %v330 = vadd.f32 %v323, %v328
    %331 = vmatprep.subr.mxu0 0.0
    %332 = vmatpush1.msra.mxu0 %v103
    %333 = vmatprep.subr.mxu0 0.0
    %334 = vmatpush1.msra.mxu0 %v104
    %335 = vmatprep.subr.mxu0 0.0
    %336 = vmatpush1.msra.mxu0 %v105
    %337 = vmatprep.subr.mxu0 0.0
    %338 = vmatpush1.msra.mxu0 %v106
    %339 = vmatprep.subr.mxu0 0.0
    %340 = vmatpush1.msra.mxu0 %v107
    %341 = vmatprep.subr.mxu0 0.0
    %342 = vmatpush1.msra.mxu0 %v108
    %343 = vmatprep.subr.mxu0 0.0
    %344 = vmatpush1.msra.mxu0 %v109
    %345 = vmatprep.subr.mxu0 0.0
    %346 = vmatpush1.msra.mxu0 %v110
    %347 = vmatprep.subr.mxu0 0.0
    %348 = vmatpush1.msra.mxu0 %v111
    %349 = vmatprep.subr.mxu0 0.0
    %350 = vmatpush1.msra.mxu0 %v112
    %351 = vmatprep.subr.mxu0 0.0
    %352 = vmatpush1.msra.mxu0 %v113
    %353 = vmatprep.subr.mxu0 0.0
    %354 = vmatpush1.msra.mxu0 %v114
    %355 = vmatprep.subr.mxu0 0.0
    %356 = vmatpush1.msra.mxu0 %v115
    %357 = vmatprep.subr.mxu0 0.0
    %358 = vmatpush1.msra.mxu0 %v116
    %359 = vmatprep.subr.mxu0 0.0
    %360 = vmatpush1.msra.mxu0 %v117
    %361 = vmatprep.subr.mxu0 0.0
    %362 = vmatpush1.msra.mxu0 %v118
    %363 = vmatprep.subr.mxu0 0.0
    %364 = vmatpush1.msra.mxu0 0.0
    %365 = vmatprep.subr.mxu0 0.0
    %366 = vmatpush1.msra.mxu0 0.0
    %367 = vmatprep.subr.mxu0 0.0
    %368 = vmatpush1.msra.mxu0 0.0
    %369 = vmatprep.subr.mxu0 0.0
    %370 = vmatpush1.msra.mxu0 0.0
    %371 = vmatprep.subr.mxu0 0.0
    %372 = vmatpush1.msra.mxu0 0.0
    %373 = vmatprep.subr.mxu0 0.0
    %374 = vmatpush1.msra.mxu0 0.0
    %375 = vmatprep.subr.mxu0 0.0
    %376 = vmatpush1.msra.mxu0 0.0
    %377 = vmatprep.subr.mxu0 0.0
    %378 = vmatpush1.msra.mxu0 0.0
    %379 = vmatprep.subr.mxu0 0.0
    %380 = vmatpush1.msra.mxu0 0.0
    %381 = vmatprep.subr.mxu0 0.0
    %382 = vmatpush1.msra.mxu0 0.0
    %383 = vmatprep.subr.mxu0 0.0
    %384 = vmatpush1.msra.mxu0 0.0
    %385 = vmatprep.subr.mxu0 0.0
    %386 = vmatpush1.msra.mxu0 0.0
    %387 = vmatprep.subr.mxu0 0.0
    %388 = vmatpush1.msra.mxu0 0.0
    %389 = vmatprep.subr.mxu0 0.0
    %390 = vmatpush1.msra.mxu0 0.0
    %391 = vmatprep.subr.mxu0 0.0
    %392 = vmatpush1.msra.mxu0 0.0
    %393 = vmatprep.subr.mxu0 0.0
    %394 = vmatpush1.msra.mxu0 0.0
    %395 = vmatprep.mubr.f32.mxu0 0.0
    %396 = vmatmul.mubr.f32.gmra.mrb[0].mxu0 %v330
    %v397 = vpop.f32.mrb[0].mxu0
    %v398 = vadd.f32 0.0, %v397
    %v399 = vpop.f32.mrb[0].mxu0
    %400 = vdwg.mxu0
    %401 = vst [vmem:[#allocation8] sm:$0xff] %v398
    // Predicated region
    $region46: #{forward.1} parent=1 // pred_check
      _
    $region47: #{forward.1} parent=1 // pred_check_branch
      %403 = sbr.rel (0) target = $region49
    $region48: #{forward.1} parent=1 // pred_region
      %s405 = ssub.s32 128, 128
      %406 = vsyncadd [#allocation4], %s405
      %s408 = sshll.u32 [#allocation8], 4
      %s409 = int_to_ptr.vmem [resolvable:$true] %s408
      %411 = dma.vmem_to_hbm [thread:$0]  %s409, 128, %s8, [#allocation4]
    $region49: #{forward.1} parent=1 // pred_fallthru
      _
    // Predicated region
    $region50: #{forward.1} parent=1 // pred_check
      _
    $region51: #{forward.1} parent=1 // pred_check_branch
      %413 = sbr.rel (0) target = $region53
    $region52: #{forward.1} parent=1 // pred_region
      %414 = dma.done [#allocation4], 128
    $region53: #{forward.1} parent=1 // pred_fallthru
      _
    %415 = vsyncpa [#allocation3], 1
    %416 = vsyncpa [#allocation6], 1
    %417 = vsyncpa [#allocation4], 1

</llo_original>
